<compile_context>
chip_gen: v6e
topology: v6e:2x2x1
jax: 0.10.0
libtpu: 0.0.40
codegen_flags: <defaults>
</compile_context>

<pallas_src>
import functools

import jax
import jax.numpy as jnp
from jax.experimental import pallas as pl
from jax.experimental.pallas import tpu as pltpu


def _ffn_kernel(x_ref, w12_ref, b12_ref, w3_ref, b3_ref, o_ref, acc_ref, *, tile_h):
    """One (block_m, tile_h) step of the gated FFN with fc3 accumulation."""
    h = pl.program_id(1)

    @pl.when(h == 0)
    def _init():
        acc_ref[...] = jnp.zeros_like(acc_ref)

    x = x_ref[...]                                                  # (tm, E)

    # Fused fc1|fc2: a single MXU pass yields both pre-activations for this
    # H tile; bias slice is packed the same way.
    h12 = jnp.dot(x, w12_ref[...], preferred_element_type=jnp.float32) + b12_ref[...]
    pre_gate = h12[:, :tile_h]                                      # fc1 slice
    pre_tr = h12[:, tile_h:]                                        # fc2 slice

    # sigmoid = 1 / (1 + exp(-x)); exp and the approximate reciprocal both run
    # on the EUP slot instead of burning VALU slots on an exact divide.
    gate = pl.reciprocal(1.0 + jnp.exp(-pre_gate), approx=True)
    hidden = gate * jnp.maximum(pre_tr, 0.0)                        # (tm, tile_h)

    # Partial fc3 product for this H tile, accumulated in f32.
    acc_ref[...] += jnp.dot(hidden.astype(w3_ref.dtype), w3_ref[...],
                            preferred_element_type=jnp.float32)

    @pl.when(h == pl.num_programs(1) - 1)
    def _finalize():
        o_ref[...] = (acc_ref[...] + b3_ref[...]).astype(o_ref.dtype)


def _largest_divisor_tile(n, cap, align):
    """Largest t <= cap with t % align == 0 and n % t == 0; fallback: full n."""
    best = None
    t = align
    while t <= min(n, cap):
        if n % t == 0:
            best = t
        t += align
    return best if best is not None else n


@functools.partial(jax.jit, static_argnames=("block_m", "tile_h"))
def feed_forward(x, w1, b1, w2, b2, w3, b3, *, block_m=None, tile_h=None):
    """x: [B, S, E] -> [B, S, E].  Weights stored [in, out], biases [1, out]."""
    B, S, E = x.shape
    H = w1.shape[1]
    M = B * S

    if block_m is None:
        block_m = _largest_divisor_tile(M, 256, 8)     # 256-aligned-ish token tile
    if tile_h is None:
        tile_h = _largest_divisor_tile(H, 512, 64)     # H reduction tile

    # (8, 128)-tiling legality for every BlockSpec used below.
    assert M % block_m == 0 and (block_m % 8 == 0 or block_m == M), "bad block_m"
    assert H % tile_h == 0 and ((2 * tile_h) % 128 == 0 or tile_h == H), "bad tile_h"

    ht = H // tile_h
    xf = x.reshape(M, E)

    # Pack fc1|fc2 so H-tile `h` holds [w1[:, h*th:(h+1)*th] | w2[:, ...]]
    # contiguously -> one fused (E, 2*tile_h) matmul per step.
    # (One-time weight prep; do it at load time in production.)
    w12 = jnp.concatenate(
        [w1.reshape(E, ht, tile_h), w2.reshape(E, ht, tile_h)], axis=-1
    ).reshape(E, ht * 2 * tile_h)
    b12 = jnp.concatenate(
        [b1.reshape(1, ht, tile_h), b2.reshape(1, ht, tile_h)], axis=-1
    ).reshape(1, ht * 2 * tile_h)

    kernel = functools.partial(_ffn_kernel, tile_h=tile_h)

    out_flat = pl.pallas_call(
        kernel,
        out_shape=jax.ShapeDtypeStruct((M, E), x.dtype),
        grid_spec=pltpu.PrefetchScalarGridSpec(
            num_scalar_prefetch=0,
            grid=(M // block_m, ht),                  # (token tiles, H reduction)
            in_specs=[
                pl.BlockSpec((block_m, E), lambda m, h: (m, 0)),      # x tile
                pl.BlockSpec((E, 2 * tile_h), lambda m, h: (0, h)),   # fused w1|w2 tile
                pl.BlockSpec((1, 2 * tile_h), lambda m, h: (0, h)),   # fused b1|b2 tile
                pl.BlockSpec((tile_h, E), lambda m, h: (h, 0)),       # w3 tile
                pl.BlockSpec((1, E), lambda m, h: (0, 0)),            # b3
            ],
            out_specs=pl.BlockSpec((block_m, E), lambda m, h: (m, 0)),
            scratch_shapes=[pltpu.VMEM((block_m, E), jnp.float32)],   # fc3 accumulator
        ),
        compiler_params=pltpu.CompilerParams(
            dimension_semantics=("parallel", "arbitrary"),
            vmem_limit_bytes=48 * 1024 * 1024,        # safe on v5e/v6e/v7x (64 MiB phys)
        ),
    )(xf, w12, b12, w3, b3)

    return out_flat.reshape(B, S, E)


def init_params(key, embed_size, ff_hidden_dim, dtype=jnp.float32):
    """Deterministic synthetic init (uniform, PyTorch-Linear-like fan-in scale)."""
    k1, k2, k3, k4, k5, k6 = jax.random.split(key, 6)

    def lin(kw, kb, fan_in, fan_out):
        bound = 1.0 / jnp.sqrt(fan_in)
        # stored as [in, out] (transpose of torch's [out, in])
        w = jax.random.uniform(kw, (fan_in, fan_out), dtype, -bound, bound)
        b = jax.random.uniform(kb, (1, fan_out), dtype, -bound, bound)
        return w, b

    w1, b1 = lin(k1, k2, embed_size, ff_hidden_dim)   # fc1
    w2, b2 = lin(k3, k4, embed_size, ff_hidden_dim)   # fc2
    w3, b3 = lin(k5, k6, ff_hidden_dim, embed_size)   # fc3
    return w1, b1, w2, b2, w3, b3


def feed_forward_ref(x, w1, b1, w2, b2, w3, b3):
    """Pure-JAX reference matching the PyTorch forward."""
    gate = jax.nn.sigmoid(x @ w1 + b1[0])
    transformed = jax.nn.relu(x @ w2 + b2[0])
    return (gate * transformed) @ w3 + b3[0]


if __name__ == "__main__":
    # Small shapes, but chosen so both grid axes have >= 2 steps and every
    # block respects the (8, 128) tiling rule.
    B, S, E, H = 2, 8, 128, 256
    key = jax.random.PRNGKey(0)
    kx, kp = jax.random.split(key)

    x = jax.random.normal(kx, (B, S, E), jnp.float32)
    params = init_params(kp, E, H)

    # block_m=8 -> 2 token tiles (parallel axis), tile_h=128 -> 2 H steps
    # (accumulated reduction axis).
    out = feed_forward(x, *params, block_m=8, tile_h=128)
    out = jax.block_until_ready(out)

    ref = feed_forward_ref(x, *params)
    assert out.shape == (B, S, E)
    # Tolerance covers the EUP approximate-reciprocal sigmoid (still far below
    # any real-bug error scale).
    assert jnp.allclose(out, ref, atol=5e-3, rtol=5e-3), "mismatch vs reference"

    print("KERNEL_OK")
</pallas_src>

<mosaic_0001>
module attributes {stable_mosaic.version = 11 : i64} {
  func.func @_ffn_kernel(%arg0: i32, %arg1: i32, %arg2: memref<8x128xf32, #tpu.memory_space<vmem>>, %arg3: memref<128x256xf32, #tpu.memory_space<vmem>>, %arg4: memref<1x256xf32, #tpu.memory_space<vmem>>, %arg5: memref<128x128xf32, #tpu.memory_space<vmem>>, %arg6: memref<1x128xf32, #tpu.memory_space<vmem>>, %arg7: memref<8x128xf32, #tpu.memory_space<vmem>>, %arg8: memref<8x128xf32, #tpu.memory_space<vmem>>) attributes {dimension_semantics = [#tpu.dimension_semantics<parallel>, #tpu.dimension_semantics<arbitrary>], iteration_bounds = array<i64: 2, 2>, scalar_prefetch = 0 : i64, scratch_operands = 1 : i64, tpu.core_type = #tpu.core_type<tc>, window_params = [{transform_indices = @transform_0, window_bounds = array<i64: 8, 128>}, {transform_indices = @transform_1, window_bounds = array<i64: 128, 256>}, {transform_indices = @transform_2, window_bounds = array<i64: 1, 256>}, {transform_indices = @transform_3, window_bounds = array<i64: 128, 128>}, {pipeline_mode = #tpu.pipeline_mode<synchronous>, transform_indices = @transform_4, window_bounds = array<i64: 1, 128>}, {transform_indices = @transform_5, window_bounds = array<i64: 8, 128>}]} {
    %c0_i32 = arith.constant 0 : i32
    %0 = arith.cmpi eq, %arg1, %c0_i32 : i32
    %1 = arith.extui %0 : i1 to i32
    %c0_i32_0 = arith.constant 0 : i32
    %2 = arith.cmpi ne, %1, %c0_i32_0 : i32
    scf.if %2 {
      %cst_17 = arith.constant 0.000000e+00 : f32
      %28 = vector.broadcast %cst_17 : f32 to vector<8x128xf32>
      %c0_18 = arith.constant 0 : index
      %c0_19 = arith.constant 0 : index
      %29 = vector.load %arg8[%c0_18, %c0_19] : memref<8x128xf32, #tpu.memory_space<vmem>>, vector<8x128xf32>
      tpu.vector_store %arg8[%c0_18, %c0_19], %28 {strides = array<i32>} : memref<8x128xf32, #tpu.memory_space<vmem>>, vector<8x128xf32>,
    } else {
    }
    %c0 = arith.constant 0 : index
    %c0_1 = arith.constant 0 : index
    %3 = vector.load %arg2[%c0, %c0_1] : memref<8x128xf32, #tpu.memory_space<vmem>>, vector<8x128xf32>
    %c0_2 = arith.constant 0 : index
    %c0_3 = arith.constant 0 : index
    %4 = vector.load %arg3[%c0_2, %c0_3] : memref<128x256xf32, #tpu.memory_space<vmem>>, vector<128x256xf32>
    %cst = arith.constant dense<0.000000e+00> : vector<8x256xf32>
    %5 = tpu.matmul %3, %4, %cst {dimension_numbers = #tpu.dot_dimension_numbers<[1], [0], [0], [1], [0, 0, 1, 1], [], []>} : vector<8x128xf32>, vector<128x256xf32>, vector<8x256xf32> -> vector<8x256xf32>
    %c0_4 = arith.constant 0 : index
    %c0_5 = arith.constant 0 : index
    %6 = vector.load %arg4[%c0_4, %c0_5] : memref<1x256xf32, #tpu.memory_space<vmem>>, vector<1x256xf32>
    %7 = vector.broadcast %6 : vector<1x256xf32> to vector<8x256xf32>
    %8 = arith.addf %5, %7 : vector<8x256xf32>
    %9 = vector.extract_strided_slice %8 {offsets = [0, 0], sizes = [8, 128], strides = [1, 1]} : vector<8x256xf32> to vector<8x128xf32>
    %10 = vector.extract_strided_slice %8 {offsets = [0, 128], sizes = [8, 128], strides = [1, 1]} : vector<8x256xf32> to vector<8x128xf32>
    %cst_6 = arith.constant 0.000000e+00 : f32
    %11 = vector.broadcast %cst_6 : f32 to vector<8x128xf32>
    %12 = arith.subf %11, %9 : vector<8x128xf32>
    %13 = math.exp %12 : vector<8x128xf32>
    %cst_7 = arith.constant 1.000000e+00 : f32
    %14 = vector.broadcast %cst_7 : f32 to vector<8x128xf32>
    %15 = arith.addf %14, %13 : vector<8x128xf32>
    %16 = tpu.reciprocal %15 {approx = true} : vector<8x128xf32> -> vector<8x128xf32>
    %cst_8 = arith.constant 0.000000e+00 : f32
    %17 = vector.broadcast %cst_8 : f32 to vector<8x128xf32>
    %18 = arith.maximumf %10, %17 : vector<8x128xf32>
    %19 = arith.mulf %16, %18 : vector<8x128xf32>
    %c0_9 = arith.constant 0 : index
    %c0_10 = arith.constant 0 : index
    %20 = vector.load %arg8[%c0_9, %c0_10] : memref<8x128xf32, #tpu.memory_space<vmem>>, vector<8x128xf32>
    %c0_11 = arith.constant 0 : index
    %c0_12 = arith.constant 0 : index
    %21 = vector.load %arg5[%c0_11, %c0_12] : memref<128x128xf32, #tpu.memory_space<vmem>>, vector<128x128xf32>
    %cst_13 = arith.constant dense<0.000000e+00> : vector<8x128xf32>
    %22 = tpu.matmul %19, %21, %cst_13 {dimension_numbers = #tpu.dot_dimension_numbers<[1], [0], [0], [1], [0, 0, 1, 1], [], []>} : vector<8x128xf32>, vector<128x128xf32>, vector<8x128xf32> -> vector<8x128xf32>
    %23 = arith.addf %20, %22 : vector<8x128xf32>
    %c0_14 = arith.constant 0 : index
    %c0_15 = arith.constant 0 : index
    %24 = vector.load %arg8[%c0_14, %c0_15] : memref<8x128xf32, #tpu.memory_space<vmem>>, vector<8x128xf32>
    tpu.vector_store %arg8[%c0_14, %c0_15], %23 {strides = array<i32>} : memref<8x128xf32, #tpu.memory_space<vmem>>, vector<8x128xf32>,
    %c1_i32 = arith.constant 1 : i32
    %25 = arith.cmpi eq, %arg1, %c1_i32 : i32
    %26 = arith.extui %25 : i1 to i32
    %c0_i32_16 = arith.constant 0 : i32
    %27 = arith.cmpi ne, %26, %c0_i32_16 : i32
    scf.if %27 {
      %c0_17 = arith.constant 0 : index
      %c0_18 = arith.constant 0 : index
      %28 = vector.load %arg8[%c0_17, %c0_18] : memref<8x128xf32, #tpu.memory_space<vmem>>, vector<8x128xf32>
      %c0_19 = arith.constant 0 : index
      %c0_20 = arith.constant 0 : index
      %29 = vector.load %arg6[%c0_19, %c0_20] : memref<1x128xf32, #tpu.memory_space<vmem>>, vector<1x128xf32>
      %30 = vector.broadcast %29 : vector<1x128xf32> to vector<8x128xf32>
      %31 = arith.addf %28, %30 : vector<8x128xf32>
      %c0_21 = arith.constant 0 : index
      %c0_22 = arith.constant 0 : index
      %32 = vector.load %arg7[%c0_21, %c0_22] : memref<8x128xf32, #tpu.memory_space<vmem>>, vector<8x128xf32>
      tpu.vector_store %arg7[%c0_21, %c0_22], %31 {strides = array<i32>} : memref<8x128xf32, #tpu.memory_space<vmem>>, vector<8x128xf32>,
    } else {
    }
    return
  }
  func.func @transform_0(%arg0: i32, %arg1: i32) -> (i32, i32) {
    %c0_i32 = arith.constant 0 : i32
    %c0_i32_0 = arith.constant 0 : i32
    return %arg0, %c0_i32 : i32, i32
  }
  func.func @transform_1(%arg0: i32, %arg1: i32) -> (i32, i32) {
    %c0_i32 = arith.constant 0 : i32
    %c0_i32_0 = arith.constant 0 : i32
    return %c0_i32, %arg1 : i32, i32
  }
  func.func @transform_2(%arg0: i32, %arg1: i32) -> (i32, i32) {
    %c0_i32 = arith.constant 0 : i32
    %c0_i32_0 = arith.constant 0 : i32
    return %c0_i32, %arg1 : i32, i32
  }
  func.func @transform_3(%arg0: i32, %arg1: i32) -> (i32, i32) {
    %c0_i32 = arith.constant 0 : i32
    %c0_i32_0 = arith.constant 0 : i32
    return %arg1, %c0_i32 : i32, i32
  }
  func.func @transform_4(%arg0: i32, %arg1: i32) -> (i32, i32) {
    %c0_i32 = arith.constant 0 : i32
    %c0_i32_0 = arith.constant 0 : i32
    %c0_i32_1 = arith.constant 0 : i32
    return %c0_i32, %c0_i32_0 : i32, i32
  }
  func.func @transform_5(%arg0: i32, %arg1: i32) -> (i32, i32) {
    %c0_i32 = arith.constant 0 : i32
    %c0_i32_0 = arith.constant 0 : i32
    return %arg0, %c0_i32 : i32, i32
  }
}

</mosaic_0001>

<llo_original>
// kernel: feed_forward.1
$region0: #{feed_forward.1}
  #allocation0 [shape = 'u32[]', space=smem, size = 0x4, offset = 0x4, fixed_abs, tag = 'smem constant byte address 0x4 - core index']
  #allocation1 [shape = 'u32[144,128]{1,0:T(1,128)}', space=vmem, size = 0x12000, scoped, tag = 'internal scratch']
  #allocation2 [shape = 'f32[8,128]{1,0:T(8,128)}', space=vmem, size = 0x1000, scoped, tag = 'scratch operand']
  %s0 = inlined_call_operand.vmem [shape: f32[16,128], index: 0, kind: input, shape index: {}]
  %s1 = inlined_call_operand.vmem [shape: f32[128,512], index: 1, kind: input, shape index: {}]
  %s2 = inlined_call_operand.vmem [shape: f32[1,512], index: 2, kind: input, shape index: {}]
  %s3 = inlined_call_operand.vmem [shape: f32[256,128], index: 3, kind: input, shape index: {}]
  %s4 = inlined_call_operand.vmem [shape: f32[1,128], index: 4, kind: input, shape index: {}]
  %s5 = inlined_call_operand.hbm [shape: f32[16,128], index: 5, kind: output, shape index: {}]
  %s6 = sld [smem:[#allocation0]]
  $region84: #{feed_forward.1} parent=0
    _
  %s8 = ssub.s32 1, %s6
  %s9 = scalar_select 0, %s8, %s6
  $region1: #{feed_forward.1} parent=0
    #allocation3 [shape = 'u8[262144]{0}', space=vmem, size = 0x40000, scoped, tag = 'input window, operand 1']
    #allocation4 [shape = 'u8[8192]{0}', space=vmem, size = 0x2000, scoped, tag = 'output window, operand 0']
    #allocation5 [shape = 's32[2]{0}', space=sflag, size = 0x8, scoped, tag = 'scoped memory for feed_forward.1']
    %10 = vsyncpa [#allocation5], 0
    %s11 = scalar_lea.sflag [#allocation5], 1
    %12 = vsyncpa %s11, 0
    loop: start=0, step=1, limit=6
    $region2: #{feed_forward.1} parent=1 // loop_pre_header
      _
    $region3: #{feed_forward.1} parent=1 // loop_header
      %s14 = sphi 0, %s18
      %p15 = scmp.ge.s32.totalorder %s14, 6
      %s21 = sphi 0, %s33
      %s22 = sphi 0, %s29
      %s23 = sphi 0, %s21
      %s24 = sphi 0, %s22
      %s25 = sphi 0, %s23
      %s26 = sphi 0, %s24
      %s36 = sphi 0, %s38
      %s39 = sphi 0, %s36
      %s40 = sphi 0, %s39
      %s56 = sphi 0, %s40
      %s62 = sphi 0, %s64
      %s65 = sphi 0, %s62
      %s66 = sphi 0, %s65
      %s82 = sphi 0, %s66
      %s88 = sphi 0, %s90
      %s91 = sphi 0, %s88
      %s92 = sphi 0, %s91
      %s108 = sphi 0, %s92
      %s114 = sphi 0, %s116
      %s117 = sphi 0, %s114
      %s118 = sphi 0, %s117
      %s134 = sphi 0, %s118
      %s138 = sphi 0, %s138
      %s140 = sphi 0, %s138
      %s141 = sphi 0, %s140
      %s155 = sphi 0, %s141
      %s161 = sphi 0, %s163
      %s164 = sphi 0, %s161
      %s165 = sphi 0, %s164
      %s181 = sphi 0, %s165
    $region4: #{feed_forward.1} parent=1 // loop_header_branch
      %17 = sbr.rel (%p15) target = $region8
    $region5: #{feed_forward.1} parent=1 // loop_body
      %s19 = ssub.s32 %s14, 1
      %s20 = ssub.s32 %s14, 2
      %s27 = sadd.s32 1, %s22
      %p28 = scmp.ge.s32.totalorder %s27, 2
      %s29 = scalar_select %p28, 0, %s27
      %s30 = sadd.s32 1, %s21
      %s31 = scalar_select %p28, %s30, %s21
      %p32 = scmp.ge.s32.totalorder %s31, 2
      %s33 = scalar_select %p32, 0, %s31
      %s34 = ssub.s32 %s21, %s33
      %p35 = scmp.eq.s32.totalorder %s34, 0
      %s37 = sadd.s32 %s36, 1
      %s38 = scalar_select %p35, %s36, %s37
      %p41 = pneg %p35
      %p42 = scmp.eq.s32.totalorder %s14, 3
      %p43 = por %p41, %p42
      %p44 = scmp.ne.s32.totalorder %s36, %s39
      %p45 = scmp.eq.s32.totalorder %s14, 0
      %p46 = por %p44, %p45
      %p47 = scmp.ne.s32.totalorder %s36, %s39
      %p48 = scmp.eq.s32.totalorder %s19, 3
      %p49 = por %p47, %p48
      %p50 = scmp.ne.s32.totalorder %s39, %s40
      %p51 = scmp.eq.s32.totalorder %s19, 0
      %p52 = por %p50, %p51
      %p53 = scmp.ne.s32.totalorder %s39, %s40
      %p54 = scmp.eq.s32.totalorder %s20, 3
      %p55 = por %p53, %p54
      %p57 = scmp.ne.s32.totalorder %s40, %s56
      %p58 = scmp.eq.s32.totalorder %s20, 0
      %p59 = por %p57, %p58
      %s60 = ssub.s32 %s22, %s29
      %p61 = scmp.eq.s32.totalorder %s60, 0
      %s63 = sadd.s32 %s62, 1
      %s64 = scalar_select %p61, %s62, %s63
      %p67 = pneg %p61
      %p68 = scmp.eq.s32.totalorder %s14, 3
      %p69 = por %p67, %p68
      %p70 = scmp.ne.s32.totalorder %s62, %s65
      %p71 = scmp.eq.s32.totalorder %s14, 0
      %p72 = por %p70, %p71
      %p73 = scmp.ne.s32.totalorder %s62, %s65
      %p74 = scmp.eq.s32.totalorder %s19, 3
      %p75 = por %p73, %p74
      %p76 = scmp.ne.s32.totalorder %s65, %s66
      %p77 = scmp.eq.s32.totalorder %s19, 0
      %p78 = por %p76, %p77
      %p79 = scmp.ne.s32.totalorder %s65, %s66
      %p80 = scmp.eq.s32.totalorder %s20, 3
      %p81 = por %p79, %p80
      %p83 = scmp.ne.s32.totalorder %s66, %s82
      %p84 = scmp.eq.s32.totalorder %s20, 0
      %p85 = por %p83, %p84
      %s86 = ssub.s32 %s22, %s29
      %p87 = scmp.eq.s32.totalorder %s86, 0
      %s89 = sadd.s32 %s88, 1
      %s90 = scalar_select %p87, %s88, %s89
      %p93 = pneg %p87
      %p94 = scmp.eq.s32.totalorder %s14, 3
      %p95 = por %p93, %p94
      %p96 = scmp.ne.s32.totalorder %s88, %s91
      %p97 = scmp.eq.s32.totalorder %s14, 0
      %p98 = por %p96, %p97
      %p99 = scmp.ne.s32.totalorder %s88, %s91
      %p100 = scmp.eq.s32.totalorder %s19, 3
      %p101 = por %p99, %p100
      %p102 = scmp.ne.s32.totalorder %s91, %s92
      %p103 = scmp.eq.s32.totalorder %s19, 0
      %p104 = por %p102, %p103
      %p105 = scmp.ne.s32.totalorder %s91, %s92
      %p106 = scmp.eq.s32.totalorder %s20, 3
      %p107 = por %p105, %p106
      %p109 = scmp.ne.s32.totalorder %s92, %s108
      %p110 = scmp.eq.s32.totalorder %s20, 0
      %p111 = por %p109, %p110
      %s112 = ssub.s32 %s22, %s29
      %p113 = scmp.eq.s32.totalorder %s112, 0
      %s115 = sadd.s32 %s114, 1
      %s116 = scalar_select %p113, %s114, %s115
      %p119 = pneg %p113
      %p120 = scmp.eq.s32.totalorder %s14, 3
      %p121 = por %p119, %p120
      %p122 = scmp.ne.s32.totalorder %s114, %s117
      %p123 = scmp.eq.s32.totalorder %s14, 0
      %p124 = por %p122, %p123
      %p125 = scmp.ne.s32.totalorder %s114, %s117
      %p126 = scmp.eq.s32.totalorder %s19, 3
      %p127 = por %p125, %p126
      %p128 = scmp.ne.s32.totalorder %s117, %s118
      %p129 = scmp.eq.s32.totalorder %s19, 0
      %p130 = por %p128, %p129
      %p131 = scmp.ne.s32.totalorder %s117, %s118
      %p132 = scmp.eq.s32.totalorder %s20, 3
      %p133 = por %p131, %p132
      %p135 = scmp.ne.s32.totalorder %s118, %s134
      %p136 = scmp.eq.s32.totalorder %s20, 0
      %p137 = por %p135, %p136
      %s139 = sadd.s32 %s138, 1
      %p142 = scmp.eq.s32.totalorder %s14, 3
      %p143 = scmp.ne.s32.totalorder %s138, %s140
      %p144 = scmp.eq.s32.totalorder %s14, 0
      %p145 = por %p143, %p144
      %p146 = scmp.ne.s32.totalorder %s138, %s140
      %p147 = scmp.eq.s32.totalorder %s19, 3
      %p148 = por %p146, %p147
      %p149 = scmp.ne.s32.totalorder %s140, %s141
      %p150 = scmp.eq.s32.totalorder %s19, 0
      %p151 = por %p149, %p150
      %p152 = scmp.ne.s32.totalorder %s140, %s141
      %p153 = scmp.eq.s32.totalorder %s20, 3
      %p154 = por %p152, %p153
      %p156 = scmp.ne.s32.totalorder %s141, %s155
      %p157 = scmp.eq.s32.totalorder %s20, 0
      %p158 = por %p156, %p157
      %s159 = ssub.s32 %s21, %s33
      %p160 = scmp.eq.s32.totalorder %s159, 0
      %s162 = sadd.s32 %s161, 1
      %s163 = scalar_select %p160, %s161, %s162
      %p166 = pneg %p160
      %p167 = scmp.eq.s32.totalorder %s14, 3
      %p168 = por %p166, %p167
      %p169 = scmp.ne.s32.totalorder %s161, %s164
      %p170 = scmp.eq.s32.totalorder %s14, 0
      %p171 = por %p169, %p170
      %p172 = scmp.ne.s32.totalorder %s161, %s164
      %p173 = scmp.eq.s32.totalorder %s19, 3
      %p174 = por %p172, %p173
      %p175 = scmp.ne.s32.totalorder %s164, %s165
      %p176 = scmp.eq.s32.totalorder %s19, 0
      %p177 = por %p175, %p176
      %p178 = scmp.ne.s32.totalorder %s164, %s165
      %p179 = scmp.eq.s32.totalorder %s20, 3
      %p180 = por %p178, %p179
      %p182 = scmp.ne.s32.totalorder %s165, %s181
      %p183 = scmp.eq.s32.totalorder %s20, 0
      %p184 = por %p182, %p183
      %p185 = scmp.le.s32.totalorder 1, %s14
      %p186 = scmp.lt.s32.totalorder %s14, 5
      %p187 = pnand %p185, %p186
      %p188 = pneg %p187
      // Predicated region
      $region9: #{feed_forward.1} parent=5 // pred_check
        _
      $region10: #{feed_forward.1} parent=5 // pred_check_branch
        %190 = sbr.rel (%p187) target = $region12
      $region11: #{feed_forward.1} parent=5 // pred_region
        %s191 = ssub.s32 %s14, 1
        // Predicated region
        $region13: #{feed_forward.1} parent=11 // pred_check
          %p192 = pneg %p151
        $region14: #{feed_forward.1} parent=11 // pred_check_branch
          %194 = sbr.rel (%p192) target = $region16
        $region15: #{feed_forward.1} parent=11 // pred_region
          _
        $region16: #{feed_forward.1} parent=11 // pred_fallthru
          _
      $region12: #{feed_forward.1} parent=5 // pred_fallthru
        _
      %p195 = scmp.lt.s32.totalorder %s14, 4
      // Predicated region
      $region17: #{feed_forward.1} parent=5 // pred_check
        %p196 = pneg %p195
      $region18: #{feed_forward.1} parent=5 // pred_check_branch
        %198 = sbr.rel (%p196) target = $region20
      $region19: #{feed_forward.1} parent=5 // pred_region
        // Predicated region
        $region21: #{feed_forward.1} parent=19 // pred_check
          %p199 = pneg %p46
        $region22: #{feed_forward.1} parent=19 // pred_check_branch
          %201 = sbr.rel (%p199) target = $region24
        $region23: #{feed_forward.1} parent=19 // pred_region
          %p202 = scmp.lt.s32.totalorder %s21, 1
          %s203 = scalar_select %p202, %s21, 1
          %s204 = smul.addr %s203, 8
          %s205 = scalar_lea.vmem %s0, %s204
        $region24: #{feed_forward.1} parent=19 // pred_fallthru
          _
        // Predicated region
        $region25: #{feed_forward.1} parent=19 // pred_check
          %p206 = pneg %p72
        $region26: #{feed_forward.1} parent=19 // pred_check_branch
          %208 = sbr.rel (%p206) target = $region28
        $region27: #{feed_forward.1} parent=19 // pred_region
          %s209 = sand.u32 %s62, 1
          %s210 = sand.u32 %s62, 1
          %s211 = smul.addr %s210, 256
          %s212 = scalar_lea.vmem [#allocation3], %s211
          %s213 = smul.u32 2, %s22
          %s214 = smul.addr %s213, 8
          %s215 = scalar_lea.vmem %s1, %s214
          // Predicated region
          $region29: #{feed_forward.1} parent=27 // pred_check
            _
          $region30: #{feed_forward.1} parent=27 // pred_check_branch
            %217 = sbr.rel (0) target = $region32
          $region31: #{feed_forward.1} parent=27 // pred_region
            // Predicated region
            $region33: #{feed_forward.1} parent=31 // pred_check
              _
            $region34: #{feed_forward.1} parent=31 // pred_check_branch
              %219 = sbr.rel (0) target = $region36
            $region35: #{feed_forward.1} parent=31 // pred_region
              loop: start=0, step=1, limit=1
              $region37: #{feed_forward.1} parent=35 // loop_pre_header
                _
              $region38: #{feed_forward.1} parent=35 // loop_header
                %s221 = sphi 0, %s225
                %p222 = scmp.ge.s32.totalorder %s221, 1
                %s226 = sphi %s215, %s215
                %s227 = sphi %s212, %s212
              $region39: #{feed_forward.1} parent=35 // loop_header_branch
                %224 = sbr.rel (%p222) target = $region43
              $region40: #{feed_forward.1} parent=35 // loop_body
                %v228 = vld [vmem:[%s226] sm:$0xff]
                %229 = vst [vmem:[%s227] sm:$0xff] %v228
                %v230 = vld [vmem:[%s226 + $0x8] sm:$0xff]
                %231 = vst [vmem:[%s227 + $0x8] sm:$0xff] %v230
                %v232 = vld [vmem:[%s226 + $0x20] sm:$0xff]
                %233 = vst [vmem:[%s227 + $0x10] sm:$0xff] %v232
                %v234 = vld [vmem:[%s226 + $0x28] sm:$0xff]
                %235 = vst [vmem:[%s227 + $0x18] sm:$0xff] %v234
                %v236 = vld [vmem:[%s226 + $0x40] sm:$0xff]
                %237 = vst [vmem:[%s227 + $0x20] sm:$0xff] %v236
                %v238 = vld [vmem:[%s226 + $0x48] sm:$0xff]
                %239 = vst [vmem:[%s227 + $0x28] sm:$0xff] %v238
                %v240 = vld [vmem:[%s226 + $0x60] sm:$0xff]
                %241 = vst [vmem:[%s227 + $0x30] sm:$0xff] %v240
                %v242 = vld [vmem:[%s226 + $0x68] sm:$0xff]
                %243 = vst [vmem:[%s227 + $0x38] sm:$0xff] %v242
                %v244 = vld [vmem:[%s226 + $0x80] sm:$0xff]
                %245 = vst [vmem:[%s227 + $0x40] sm:$0xff] %v244
                %v246 = vld [vmem:[%s226 + $0x88] sm:$0xff]
                %247 = vst [vmem:[%s227 + $0x48] sm:$0xff] %v246
                %v248 = vld [vmem:[%s226 + $0xa0] sm:$0xff]
                %249 = vst [vmem:[%s227 + $0x50] sm:$0xff] %v248
                %v250 = vld [vmem:[%s226 + $0xa8] sm:$0xff]
                %251 = vst [vmem:[%s227 + $0x58] sm:$0xff] %v250
                %v252 = vld [vmem:[%s226 + $0xc0] sm:$0xff]
                %253 = vst [vmem:[%s227 + $0x60] sm:$0xff] %v252
                %v254 = vld [vmem:[%s226 + $0xc8] sm:$0xff]
                %255 = vst [vmem:[%s227 + $0x68] sm:$0xff] %v254
                %v256 = vld [vmem:[%s226 + $0xe0] sm:$0xff]
                %257 = vst [vmem:[%s227 + $0x70] sm:$0xff] %v256
                %v258 = vld [vmem:[%s226 + $0xe8] sm:$0xff]
                %259 = vst [vmem:[%s227 + $0x78] sm:$0xff] %v258
                %v260 = vld [vmem:[%s226 + $0x100] sm:$0xff]
                %261 = vst [vmem:[%s227 + $0x80] sm:$0xff] %v260
                %v262 = vld [vmem:[%s226 + $0x108] sm:$0xff]
                %263 = vst [vmem:[%s227 + $0x88] sm:$0xff] %v262
                %v264 = vld [vmem:[%s226 + $0x120] sm:$0xff]
                %265 = vst [vmem:[%s227 + $0x90] sm:$0xff] %v264
                %v266 = vld [vmem:[%s226 + $0x128] sm:$0xff]
                %267 = vst [vmem:[%s227 + $0x98] sm:$0xff] %v266
                %v268 = vld [vmem:[%s226 + $0x140] sm:$0xff]
                %269 = vst [vmem:[%s227 + $0xa0] sm:$0xff] %v268
                %v270 = vld [vmem:[%s226 + $0x148] sm:$0xff]
                %271 = vst [vmem:[%s227 + $0xa8] sm:$0xff] %v270
                %v272 = vld [vmem:[%s226 + $0x160] sm:$0xff]
                %273 = vst [vmem:[%s227 + $0xb0] sm:$0xff] %v272
                %v274 = vld [vmem:[%s226 + $0x168] sm:$0xff]
                %275 = vst [vmem:[%s227 + $0xb8] sm:$0xff] %v274
                %v276 = vld [vmem:[%s226 + $0x180] sm:$0xff]
                %277 = vst [vmem:[%s227 + $0xc0] sm:$0xff] %v276
                %v278 = vld [vmem:[%s226 + $0x188] sm:$0xff]
                %279 = vst [vmem:[%s227 + $0xc8] sm:$0xff] %v278
                %v280 = vld [vmem:[%s226 + $0x1a0] sm:$0xff]
                %281 = vst [vmem:[%s227 + $0xd0] sm:$0xff] %v280
                %v282 = vld [vmem:[%s226 + $0x1a8] sm:$0xff]
                %283 = vst [vmem:[%s227 + $0xd8] sm:$0xff] %v282
                %v284 = vld [vmem:[%s226 + $0x1c0] sm:$0xff]
                %285 = vst [vmem:[%s227 + $0xe0] sm:$0xff] %v284
                %v286 = vld [vmem:[%s226 + $0x1c8] sm:$0xff]
                %287 = vst [vmem:[%s227 + $0xe8] sm:$0xff] %v286
                %v288 = vld [vmem:[%s226 + $0x1e0] sm:$0xff]
                %289 = vst [vmem:[%s227 + $0xf0] sm:$0xff] %v288
                %v290 = vld [vmem:[%s226 + $0x1e8] sm:$0xff]
                %291 = vst [vmem:[%s227 + $0xf8] sm:$0xff] %v290
              $region41: #{feed_forward.1} parent=35 // loop_footer
                %s225 = sadd.s32 1, %s221
              $region42: #{feed_forward.1} parent=35 // loop_footer_branch
                %220 = sbr.rel target = $region38
              $region43: #{feed_forward.1} parent=35 // loop_exit
                _
            $region36: #{feed_forward.1} parent=31 // pred_fallthru
              _
            // Predicated region
            $region44: #{feed_forward.1} parent=31 // pred_check
              _
            $region45: #{feed_forward.1} parent=31 // pred_check_branch
              %293 = sbr.rel target = $region47
            $region46: #{feed_forward.1} parent=31 // pred_region
              _
            $region47: #{feed_forward.1} parent=31 // pred_fallthru
              _
          $region32: #{feed_forward.1} parent=27 // pred_fallthru
            _
          %294 = vnop
        $region28: #{feed_forward.1} parent=19 // pred_fallthru
          _
        // Predicated region
        $region48: #{feed_forward.1} parent=19 // pred_check
          %p295 = pneg %p98
        $region49: #{feed_forward.1} parent=19 // pred_check_branch
          %297 = sbr.rel (%p295) target = $region51
        $region50: #{feed_forward.1} parent=19 // pred_region
          %s298 = smul.u32 2, %s22
          %p299 = scmp.lt.s32.totalorder %s298, 3
          %s300 = scalar_select %p299, %s298, 3
          %s301 = scalar_lea.vmem %s2, %s300
          %s302 = smul.u32 2, %s22
        $region51: #{feed_forward.1} parent=19 // pred_fallthru
          _
        // Predicated region
        $region52: #{feed_forward.1} parent=19 // pred_check
          %p303 = pneg %p124
        $region53: #{feed_forward.1} parent=19 // pred_check_branch
          %305 = sbr.rel (%p303) target = $region55
        $region54: #{feed_forward.1} parent=19 // pred_region
          %s306 = smul.u32 16, %s22
          %p307 = scmp.lt.s32.totalorder %s306, 31
          %s308 = scalar_select %p307, %s306, 31
          %s309 = smul.addr %s308, 8
          %s310 = scalar_lea.vmem %s3, %s309
          %s311 = smul.u32 16, %s22
        $region55: #{feed_forward.1} parent=19 // pred_fallthru
          _
      $region20: #{feed_forward.1} parent=5 // pred_fallthru
        _
      %p312 = scmp.le.s32.totalorder 1, %s14
      %p313 = scmp.lt.s32.totalorder %s14, 5
      %p314 = pnand %p312, %p313
      %p315 = pneg %p314
      // Predicated region
      $region56: #{feed_forward.1} parent=5 // pred_check
        _
      $region57: #{feed_forward.1} parent=5 // pred_check_branch
        %317 = sbr.rel (%p314) target = $region59
      $region58: #{feed_forward.1} parent=5 // pred_region
        %s318 = ssub.s32 %s14, 1
        %s319 = sand.u32 %s65, 1
        %s320 = sand.u32 %s65, 1
        %s321 = smul.addr %s320, 256
        %s322 = scalar_lea.vmem [#allocation3], %s321
        // Predicated region
        $region60: #{feed_forward.1} parent=58 // pred_check
          %p323 = pneg %p78
        $region61: #{feed_forward.1} parent=58 // pred_check_branch
          %325 = sbr.rel (%p323) target = $region63
        $region62: #{feed_forward.1} parent=58 // pred_region
          _
        $region63: #{feed_forward.1} parent=58 // pred_fallthru
          _
        %p326 = scmp.lt.s32.totalorder %s23, 1
        %s327 = scalar_select %p326, %s23, 1
        %s328 = smul.addr %s327, 8
        %s329 = scalar_lea.vmem %s0, %s328
        %p330 = pneg %p52
        %p331 = pneg %p49
        %s332 = sand.u32 %s65, 1
        %s333 = sand.u32 %s65, 1
        %s334 = smul.addr %s333, 256
        %s335 = scalar_lea.vmem [#allocation3], %s334
        %p336 = pneg %p78
        %p337 = pneg %p75
        %s338 = smul.u32 2, %s24
        %p339 = scmp.lt.s32.totalorder %s338, 3
        %s340 = scalar_select %p339, %s338, 3
        %s341 = scalar_lea.vmem %s2, %s340
        %p342 = pneg %p104
        %p343 = pneg %p101
        %s344 = smul.u32 16, %s24
        %p345 = scmp.lt.s32.totalorder %s344, 31
        %s346 = scalar_select %p345, %s344, 31
        %s347 = smul.addr %s346, 8
        %s348 = scalar_lea.vmem %s3, %s347
        %p349 = pneg %p130
        %p350 = pneg %p127
        %p351 = pneg %p151
        %p352 = pneg %p148
        %p353 = pneg %p177
        %p354 = pneg %p174
        %s355 = sand.u32 %s164, 1
        %s356 = scalar_lea.sflag [#allocation5], %s355
        %s357 = sand.u32 %s164, 1
        %s358 = smul.addr %s357, 8
        %s359 = scalar_lea.vmem [#allocation4], %s358
        %p360 = scmp.lt.s32.totalorder %s23, 1
        %s361 = scalar_select %p360, %s23, 1
        %s362 = smul.addr %s361, 8
        %s363 = scalar_lea.vmem %s0, %s362
        %s364 = smul.u32 2, %s24
        %s365 = smul.u32 2, %s24
        %p366 = scmp.lt.s32.totalorder %s365, 3
        %s367 = scalar_select %p366, %s365, 3
        %s368 = scalar_lea.vmem %s2, %s367
        %s369 = smul.u32 2, %s24
        %s370 = smul.u32 16, %s24
        %p371 = scmp.lt.s32.totalorder %s370, 31
        %s372 = scalar_select %p371, %s370, 31
        %s373 = smul.addr %s372, 8
        %s374 = scalar_lea.vmem %s3, %s373
        %s375 = smul.u32 16, %s24
        %p376 = scmp.eq.s32.totalorder %s24, 0
        // Predicated region
        $region64: #{feed_forward.1} parent=58 // pred_check
          %p377 = pneg %p376
        $region65: #{feed_forward.1} parent=58 // pred_check_branch
          %379 = sbr.rel (%p377) target = $region67
        $region66: #{feed_forward.1} parent=58 // pred_region
          %380 = vst [vmem:[#allocation2] sm:$0xff] 0.0
        $region67: #{feed_forward.1} parent=58 // pred_fallthru
          _
        %v381 = vld [vmem:[%s363] sm:$0xff]
        %v382 = vld [vmem:[%s322] sm:$0xff]
        %v383 = vld [vmem:[%s322 + $0x8] sm:$0xff]
        %v384 = vld [vmem:[%s322 + $0x10] sm:$0xff]
        %v385 = vld [vmem:[%s322 + $0x18] sm:$0xff]
        %v386 = vld [vmem:[%s322 + $0x20] sm:$0xff]
        %v387 = vld [vmem:[%s322 + $0x28] sm:$0xff]
        %v388 = vld [vmem:[%s322 + $0x30] sm:$0xff]
        %v389 = vld [vmem:[%s322 + $0x38] sm:$0xff]
        %v390 = vld [vmem:[%s322 + $0x40] sm:$0xff]
        %v391 = vld [vmem:[%s322 + $0x48] sm:$0xff]
        %v392 = vld [vmem:[%s322 + $0x50] sm:$0xff]
        %v393 = vld [vmem:[%s322 + $0x58] sm:$0xff]
        %v394 = vld [vmem:[%s322 + $0x60] sm:$0xff]
        %v395 = vld [vmem:[%s322 + $0x68] sm:$0xff]
        %v396 = vld [vmem:[%s322 + $0x70] sm:$0xff]
        %v397 = vld [vmem:[%s322 + $0x78] sm:$0xff]
        %v398 = vld [vmem:[%s322 + $0x80] sm:$0xff]
        %v399 = vld [vmem:[%s322 + $0x88] sm:$0xff]
        %v400 = vld [vmem:[%s322 + $0x90] sm:$0xff]
        %v401 = vld [vmem:[%s322 + $0x98] sm:$0xff]
        %v402 = vld [vmem:[%s322 + $0xa0] sm:$0xff]
        %v403 = vld [vmem:[%s322 + $0xa8] sm:$0xff]
        %v404 = vld [vmem:[%s322 + $0xb0] sm:$0xff]
        %v405 = vld [vmem:[%s322 + $0xb8] sm:$0xff]
        %v406 = vld [vmem:[%s322 + $0xc0] sm:$0xff]
        %v407 = vld [vmem:[%s322 + $0xc8] sm:$0xff]
        %v408 = vld [vmem:[%s322 + $0xd0] sm:$0xff]
        %v409 = vld [vmem:[%s322 + $0xd8] sm:$0xff]
        %v410 = vld [vmem:[%s322 + $0xe0] sm:$0xff]
        %v411 = vld [vmem:[%s322 + $0xe8] sm:$0xff]
        %v412 = vld [vmem:[%s322 + $0xf0] sm:$0xff]
        %v413 = vld [vmem:[%s322 + $0xf8] sm:$0xff]
        %v414 = vld [vmem:[%s368] sm:$0x3]
        %v416 = vlaneseq
        %v417 = vshrl.u32 %v416, 7
        %v418 = vsub.s32 0, %v417
        %v419 = vrot.slane %v414, %v418
        %v420 = vlaneseq
        %v421 = vshrl.u32 %v420, 7
        %v422 = vsub.s32 1, %v421
        %v423 = vrot.slane %v414, %v422
        %426 = vmatprep.subr.mxu0 %v413
        %427 = vmatpush1.msra.mxu0 %v412
        %428 = vmatprep.subr.mxu0 %v411
        %429 = vmatpush1.msra.mxu0 %v410
        %430 = vmatprep.subr.mxu0 %v409
        %431 = vmatpush1.msra.mxu0 %v408
        %432 = vmatprep.subr.mxu0 %v407
        %433 = vmatpush1.msra.mxu0 %v406
        %434 = vmatprep.subr.mxu0 %v405
        %435 = vmatpush1.msra.mxu0 %v404
        %436 = vmatprep.subr.mxu0 %v403
        %437 = vmatpush1.msra.mxu0 %v402
        %438 = vmatprep.subr.mxu0 %v401
        %439 = vmatpush1.msra.mxu0 %v400
        %440 = vmatprep.subr.mxu0 %v399
        %441 = vmatpush1.msra.mxu0 %v398
        %442 = vmatprep.subr.mxu0 %v397
        %443 = vmatpush1.msra.mxu0 %v396
        %444 = vmatprep.subr.mxu0 %v395
        %445 = vmatpush1.msra.mxu0 %v394
        %446 = vmatprep.subr.mxu0 %v393
        %447 = vmatpush1.msra.mxu0 %v392
        %448 = vmatprep.subr.mxu0 %v391
        %449 = vmatpush1.msra.mxu0 %v390
        %450 = vmatprep.subr.mxu0 %v389
        %451 = vmatpush1.msra.mxu0 %v388
        %452 = vmatprep.subr.mxu0 %v387
        %453 = vmatpush1.msra.mxu0 %v386
        %454 = vmatprep.subr.mxu0 %v385
        %455 = vmatpush1.msra.mxu0 %v384
        %456 = vmatprep.subr.mxu0 %v383
        %457 = vmatpush1.msra.mxu0 %v382
        %458 = vmatprep.subr.mxu0 0.0
        %459 = vmatpush2.msra.mxu0 0.0
        %460 = vmatprep.subr.mxu0 0.0
        %461 = vmatpush2.msra.mxu0 0.0
        %462 = vmatprep.subr.mxu0 0.0
        %463 = vmatpush2.msra.mxu0 0.0
        %464 = vmatprep.subr.mxu0 0.0
        %465 = vmatpush2.msra.mxu0 0.0
        %466 = vmatprep.subr.mxu0 0.0
        %467 = vmatpush2.msra.mxu0 0.0
        %468 = vmatprep.subr.mxu0 0.0
        %469 = vmatpush2.msra.mxu0 0.0
        %470 = vmatprep.subr.mxu0 0.0
        %471 = vmatpush2.msra.mxu0 0.0
        %472 = vmatprep.subr.mxu0 0.0
        %473 = vmatpush2.msra.mxu0 0.0
        %474 = vmatprep.subr.mxu0 0.0
        %475 = vmatpush2.msra.mxu0 0.0
        %476 = vmatprep.subr.mxu0 0.0
        %477 = vmatpush2.msra.mxu0 0.0
        %478 = vmatprep.subr.mxu0 0.0
        %479 = vmatpush2.msra.mxu0 0.0
        %480 = vmatprep.subr.mxu0 0.0
        %481 = vmatpush2.msra.mxu0 0.0
        %482 = vmatprep.subr.mxu0 0.0
        %483 = vmatpush2.msra.mxu0 0.0
        %484 = vmatprep.subr.mxu0 0.0
        %485 = vmatpush2.msra.mxu0 0.0
        %486 = vmatprep.subr.mxu0 0.0
        %487 = vmatpush2.msra.mxu0 0.0
        %488 = vmatprep.subr.mxu0 0.0
        %489 = vmatpush2.msra.mxu0 0.0
        %490 = vmatprep.mubr.f32.mxu0 0.0
        %491 = vmatmul.mubr.f32.gmra.mxu0 %v381
        %v492 = vpop.f32.mrf.mxu0
        %v493 = vadd.f32 %v419, %v492
        %v494 = vpop.f32.mrf.mxu0
        %v495 = vadd.f32 %v423, %v494
        %496 = vdwg.mxu0
        %v497 = vsub.f32 0.0, %v493
        %v498 = vmul.f32 %v497, 1.442695
        %v499 = vpow.pop %v498
        %v500 = vadd.f32 %v499, 1.0
        %v501 = vrcp.pop %v500
        %v502 = vmax.f32 %v495, 0.0
        %v503 = vmul.f32 %v501, %v502
        %v504 = vld [vmem:[#allocation2] sm:$0xff]
        %v505 = vld [vmem:[%s374] sm:$0xff]
        %v506 = vld [vmem:[%s374 + $0x8] sm:$0xff]
        %v507 = vld [vmem:[%s374 + $0x10] sm:$0xff]
        %v508 = vld [vmem:[%s374 + $0x18] sm:$0xff]
        %v509 = vld [vmem:[%s374 + $0x20] sm:$0xff]
        %v510 = vld [vmem:[%s374 + $0x28] sm:$0xff]
        %v511 = vld [vmem:[%s374 + $0x30] sm:$0xff]
        %v512 = vld [vmem:[%s374 + $0x38] sm:$0xff]
        %v513 = vld [vmem:[%s374 + $0x40] sm:$0xff]
        %v514 = vld [vmem:[%s374 + $0x48] sm:$0xff]
        %v515 = vld [vmem:[%s374 + $0x50] sm:$0xff]
        %v516 = vld [vmem:[%s374 + $0x58] sm:$0xff]
        %v517 = vld [vmem:[%s374 + $0x60] sm:$0xff]
        %v518 = vld [vmem:[%s374 + $0x68] sm:$0xff]
        %v519 = vld [vmem:[%s374 + $0x70] sm:$0xff]
        %v520 = vld [vmem:[%s374 + $0x78] sm:$0xff]
        %521 = vmatprep.subr.mxu0 0.0
        %522 = vmatpush1.msra.mxu0 %v520
        %523 = vmatprep.subr.mxu0 0.0
        %524 = vmatpush1.msra.mxu0 %v519
        %525 = vmatprep.subr.mxu0 0.0
        %526 = vmatpush1.msra.mxu0 %v518
        %527 = vmatprep.subr.mxu0 0.0
        %528 = vmatpush1.msra.mxu0 %v517
        %529 = vmatprep.subr.mxu0 0.0
        %530 = vmatpush1.msra.mxu0 %v516
        %531 = vmatprep.subr.mxu0 0.0
        %532 = vmatpush1.msra.mxu0 %v515
        %533 = vmatprep.subr.mxu0 0.0
        %534 = vmatpush1.msra.mxu0 %v514
        %535 = vmatprep.subr.mxu0 0.0
        %536 = vmatpush1.msra.mxu0 %v513
        %537 = vmatprep.subr.mxu0 0.0
        %538 = vmatpush1.msra.mxu0 %v512
        %539 = vmatprep.subr.mxu0 0.0
        %540 = vmatpush1.msra.mxu0 %v511
        %541 = vmatprep.subr.mxu0 0.0
        %542 = vmatpush1.msra.mxu0 %v510
        %543 = vmatprep.subr.mxu0 0.0
        %544 = vmatpush1.msra.mxu0 %v509
        %545 = vmatprep.subr.mxu0 0.0
        %546 = vmatpush1.msra.mxu0 %v508
        %547 = vmatprep.subr.mxu0 0.0
        %548 = vmatpush1.msra.mxu0 %v507
        %549 = vmatprep.subr.mxu0 0.0
        %550 = vmatpush1.msra.mxu0 %v506
        %551 = vmatprep.subr.mxu0 0.0
        %552 = vmatpush1.msra.mxu0 %v505
        %553 = vmatprep.subr.mxu0 0.0
        %554 = vmatpush2.msra.mxu0 0.0
        %555 = vmatprep.subr.mxu0 0.0
        %556 = vmatpush2.msra.mxu0 0.0
        %557 = vmatprep.subr.mxu0 0.0
        %558 = vmatpush2.msra.mxu0 0.0
        %559 = vmatprep.subr.mxu0 0.0
        %560 = vmatpush2.msra.mxu0 0.0
        %561 = vmatprep.subr.mxu0 0.0
        %562 = vmatpush2.msra.mxu0 0.0
        %563 = vmatprep.subr.mxu0 0.0
        %564 = vmatpush2.msra.mxu0 0.0
        %565 = vmatprep.subr.mxu0 0.0
        %566 = vmatpush2.msra.mxu0 0.0
        %567 = vmatprep.subr.mxu0 0.0
        %568 = vmatpush2.msra.mxu0 0.0
        %569 = vmatprep.subr.mxu0 0.0
        %570 = vmatpush2.msra.mxu0 0.0
        %571 = vmatprep.subr.mxu0 0.0
        %572 = vmatpush2.msra.mxu0 0.0
        %573 = vmatprep.subr.mxu0 0.0
        %574 = vmatpush2.msra.mxu0 0.0
        %575 = vmatprep.subr.mxu0 0.0
        %576 = vmatpush2.msra.mxu0 0.0
        %577 = vmatprep.subr.mxu0 0.0
        %578 = vmatpush2.msra.mxu0 0.0
        %579 = vmatprep.subr.mxu0 0.0
        %580 = vmatpush2.msra.mxu0 0.0
        %581 = vmatprep.subr.mxu0 0.0
        %582 = vmatpush2.msra.mxu0 0.0
        %583 = vmatprep.subr.mxu0 0.0
        %584 = vmatpush2.msra.mxu0 0.0
        %585 = vmatprep.mubr.f32.mxu0 0.0
        %586 = vmatmul.mubr.f32.gmra.mxu0 %v503
        %v587 = vpop.f32.mrf.mxu0
        %v588 = vadd.f32 0.0, %v587
        %v589 = vpop.f32.mrf.mxu0
        %590 = vdwg.mxu0
        %v591 = vadd.f32 %v504, %v588
        %592 = vst [vmem:[#allocation2] sm:$0xff] %v591
        %p593 = scmp.eq.s32.totalorder %s24, 1
        // Predicated region
        $region68: #{feed_forward.1} parent=58 // pred_check
          %p594 = pneg %p593
        $region69: #{feed_forward.1} parent=58 // pred_check_branch
          %596 = sbr.rel (%p594) target = $region71
        $region70: #{feed_forward.1} parent=58 // pred_region
          %v597 = vld [vmem:[#allocation2] sm:$0xff]
          %v598 = vld [vmem:[%s4] sm:$0x1]
          %v600 = vlaneseq
          %v601 = vshrl.u32 %v600, 7
          %v602 = vsub.s32 0, %v601
          %v603 = vrot.slane %v598, %v602
          %v605 = vadd.f32 %v597, %v603
          %606 = vst [vmem:[%s359] sm:$0xff] %v605
        $region71: #{feed_forward.1} parent=58 // pred_fallthru
          _
        %s607 = sand.u32 %s164, 1
        %s608 = scalar_lea.sflag [#allocation5], %s607
        %s609 = sand.u32 %s164, 1
        %s610 = smul.addr %s609, 8
        %s611 = scalar_lea.vmem [#allocation4], %s610
        // Predicated region
        $region72: #{feed_forward.1} parent=58 // pred_check
          %p612 = pneg %p174
        $region73: #{feed_forward.1} parent=58 // pred_check_branch
          %614 = sbr.rel (%p612) target = $region75
        $region74: #{feed_forward.1} parent=58 // pred_region
          %s616 = ssub.s32 128, 128
          %617 = vsyncadd %s608, %s616
          %s618 = smul.addr %s23, 128
          %s619 = scalar_lea.hbm %s5, %s618
          %s621 = sshll.u32 %s611, 4
          %s622 = int_to_ptr.vmem [resolvable:$true] %s621
          %624 = dma.vmem_to_hbm [thread:$0]  %s622, 128, %s619, %s608
        $region75: #{feed_forward.1} parent=58 // pred_fallthru
          _
      $region59: #{feed_forward.1} parent=5 // pred_fallthru
        _
      %p625 = scmp.le.s32.totalorder 2, %s14
      // Predicated region
      $region76: #{feed_forward.1} parent=5 // pred_check
        %p626 = pneg %p625
      $region77: #{feed_forward.1} parent=5 // pred_check_branch
        %628 = sbr.rel (%p626) target = $region79
      $region78: #{feed_forward.1} parent=5 // pred_region
        %s629 = ssub.s32 %s14, 2
        // Predicated region
        $region80: #{feed_forward.1} parent=78 // pred_check
          %p630 = pneg %p180
        $region81: #{feed_forward.1} parent=78 // pred_check_branch
          %632 = sbr.rel (%p630) target = $region83
        $region82: #{feed_forward.1} parent=78 // pred_region
          %s633 = sand.u32 %s165, 1
          %s634 = scalar_lea.sflag [#allocation5], %s633
          %s635 = sand.u32 %s165, 1
          %s636 = smul.addr %s635, 8
          %s637 = scalar_lea.vmem [#allocation4], %s636
          %638 = dma.done %s634, 128
        $region83: #{feed_forward.1} parent=78 // pred_fallthru
          _
      $region79: #{feed_forward.1} parent=5 // pred_fallthru
        _
    $region6: #{feed_forward.1} parent=1 // loop_footer
      %s18 = sadd.s32 1, %s14
    $region7: #{feed_forward.1} parent=1 // loop_footer_branch
      %13 = sbr.rel target = $region3
    $region8: #{feed_forward.1} parent=1 // loop_exit
      _
    %639 = vsyncpa [#allocation5], 1
    %s640 = scalar_lea.sflag [#allocation5], 1
    %641 = vsyncpa %s640, 1

</llo_original>
